<compile_context>
chip_gen: v6e
topology: v6e:2x2x1
jax: 0.10.0
libtpu: 0.0.40
codegen_flags: <defaults>
</compile_context>

<pallas_src>
import jax
import jax.numpy as jnp
from jax.experimental import pallas as pl
from jax.experimental.pallas import tpu as pltpu

LANE = 128


def _round_up(n, m):
    return ((n + m - 1) // m) * m


def _sublane(dtype):
    # Rows per packed sublane group for this dtype: 8 (f32), 16 (bf16), 32 (int8/fp8).
    return max(8, 32 // jnp.dtype(dtype).itemsize)


def _vmem_capacity_bytes():
    # Hardware-info query only (kernel errors are never swallowed here).
    try:
        cap = getattr(pltpu.get_tpu_info(), "vmem_capacity_bytes", None)
        if cap:
            return int(cap)
    except Exception:
        pass
    return 64 * 2**20  # conservative (v7x-sized) default


def _choose_tb(bp8, sub, max_tb=512):
    """Batch tile minimising padded rows; ties prefer an even grid (v7x 2 TCs), then size."""
    cap = min(max_tb, bp8)
    best_key, best_tb = None, sub
    for c in range(sub, cap + 1, sub):
        padded = _round_up(bp8, c)
        steps = padded // c
        odd = 0 if (steps == 1 or steps % 2 == 0) else 1
        key = (padded, odd, -c)
        if best_key is None or key < best_key:
            best_key, best_tb = key, c
    return best_tb


def _footprint(tb, tn, Hp, csize, osize):
    # Default double-buffering on every streamed block + f32 scratch/intermediate headroom.
    return (2 * tb * Hp * csize        # x tile
            + 2 * tb * Hp * osize      # out tile
            + 2 * Hp * tn * csize      # w1 column tile
            + 2 * tn * Hp * csize      # w2 row tile
            + 2 * (tn + Hp) * 4        # biases
            + tb * Hp * 4              # f32 accumulator scratch
            + 2 * tb * tn * 4          # f32 hidden intermediate headroom
            + tb * Hp * 4)             # f32 epilogue headroom


def _tn_candidates(Hp):
    m = Hp // LANE
    return sorted({d * LANE for d in range(1, m + 1) if m % d == 0}, reverse=True)


def _choose_tiles(bp8, Hp, csize, osize, sub, budget):
    tb = _choose_tb(bp8, sub)
    tn_cands = _tn_candidates(Hp)
    while True:
        for tn in tn_cands:
            fp = _footprint(tb, tn, Hp, csize, osize)
            if fp <= budget:
                return tb, tn, fp
        if tb <= sub:
            tn = tn_cands[-1]
            return tb, tn, _footprint(tb, tn, Hp, csize, osize)
        tb = max(sub, _round_up(tb // 2, sub))


def resblock_kernel(x_ref, w1_ref, b1_ref, w2_ref, b2_ref, o_ref, acc_ref):
    k = pl.program_id(1)
    x = x_ref[...]

    @pl.when(k == 0)
    def _init():
        # Seed the accumulator with the skip connection + second-layer bias (f32).
        acc_ref[...] = x.astype(jnp.float32) + b2_ref[...]

    # First layer for this k-slice of hidden units: MXU matmul, f32 accumulation.
    h = jnp.dot(x, w1_ref[...], preferred_element_type=jnp.float32) + b1_ref[...]
    h = jnp.maximum(h, 0.0).astype(x.dtype)
    # Second-layer partial product accumulated in f32.
    acc_ref[...] += jnp.dot(h, w2_ref[...], preferred_element_type=jnp.float32)

    @pl.when(k == pl.num_programs(1) - 1)
    def _finalize():
        o_ref[...] = jnp.maximum(acc_ref[...], 0.0).astype(o_ref.dtype)


def pack_residual_block_params(w1, b1, w2, b2, *, compute_dtype=jnp.bfloat16):
    """Pad/cast parameters once (weight-stationary callers should do this up front).

    w1, w2: (H, H) in (in, out) layout (i.e. torch_linear.weight.T); b1, b2: (H,).
    Zero padding to a 128-lane multiple is mathematically exact for this block.
    """
    H = w1.shape[0]
    Hp = _round_up(max(H, LANE), LANE)
    compute_dtype = jnp.dtype(compute_dtype)
    w1_p = jnp.zeros((Hp, Hp), compute_dtype).at[:H, :H].set(w1.astype(compute_dtype))
    w2_p = jnp.zeros((Hp, Hp), compute_dtype).at[:H, :H].set(w2.astype(compute_dtype))
    b1_p = jnp.zeros((1, Hp), jnp.float32).at[:, :H].set(
        jnp.asarray(b1, jnp.float32).reshape(1, -1))
    b2_p = jnp.zeros((1, Hp), jnp.float32).at[:, :H].set(
        jnp.asarray(b2, jnp.float32).reshape(1, -1))
    return {"w1": w1_p, "b1": b1_p, "w2": w2_p, "b2": b2_p,
            "H": H, "Hp": Hp, "compute_dtype": compute_dtype}


def residual_block(x, w1=None, b1=None, w2=None, b2=None, *, packed=None,
                   tb=None, compute_dtype=jnp.bfloat16):
    """Fused y = relu(relu(x @ w1 + b1) @ w2 + b2 + x).  x: (..., H), returns x.dtype.

    Note: for H <= 128 the lane-padded MXU path wastes FLOPs relative to plain XLA
    fusion; this wrapper still routes tiny demo sizes through the Pallas kernel so the
    kernel itself is exercised.
    """
    if packed is None:
        packed = pack_residual_block_params(w1, b1, w2, b2, compute_dtype=compute_dtype)
    H, Hp = packed["H"], packed["Hp"]
    compute_dtype = packed["compute_dtype"]

    orig_shape = x.shape
    assert orig_shape[-1] == H, "last dim of x must equal hidden_size"
    x2 = x.reshape(-1, H)
    B = x2.shape[0]
    out_dtype = x.dtype

    csize = jnp.dtype(compute_dtype).itemsize
    osize = jnp.dtype(out_dtype).itemsize
    sub = _sublane(compute_dtype)
    bp8 = _round_up(B, sub)

    vmem_cap = _vmem_capacity_bytes()
    budget = int(0.85 * vmem_cap)

    if tb is None:
        tb, tn, fp = _choose_tiles(bp8, Hp, csize, osize, sub, budget)
    else:
        tb = max(sub, _round_up(min(tb, bp8), sub))
        tn_cands = _tn_candidates(Hp)
        tn = next((t for t in tn_cands
                   if _footprint(tb, t, Hp, csize, osize) <= budget), tn_cands[-1])
        fp = _footprint(tb, tn, Hp, csize, osize)

    Bp = _round_up(bp8, tb)
    grid = (Bp // tb, Hp // tn)

    # Skip the padding/cast copy of x entirely when shapes and dtype already align.
    if Bp == B and Hp == H and x2.dtype == compute_dtype:
        x_p = x2
    else:
        x_p = jnp.zeros((Bp, Hp), compute_dtype).at[:B, :H].set(x2.astype(compute_dtype))

    vmem_limit = int(min(0.9 * vmem_cap, max(32 * 2**20, 1.3 * fp)))

    out_p = pl.pallas_call(
        resblock_kernel,
        out_shape=jax.ShapeDtypeStruct((Bp, Hp), out_dtype),
        grid_spec=pltpu.PrefetchScalarGridSpec(
            num_scalar_prefetch=0,
            grid=grid,
            in_specs=[
                pl.BlockSpec((tb, Hp), lambda i, k: (i, 0)),   # x tile (resident over k)
                pl.BlockSpec((Hp, tn), lambda i, k: (0, k)),   # w1 column tile
                pl.BlockSpec((1, tn), lambda i, k: (0, k)),    # b1 tile
                pl.BlockSpec((tn, Hp), lambda i, k: (k, 0)),   # w2 row tile
                pl.BlockSpec((1, Hp), lambda i, k: (0, 0)),    # b2 (constant)
            ],
            out_specs=pl.BlockSpec((tb, Hp), lambda i, k: (i, 0)),
            scratch_shapes=[pltpu.VMEM((tb, Hp), jnp.float32)],
        ),
        compiler_params=pltpu.CompilerParams(
            dimension_semantics=("parallel", "arbitrary"),
            vmem_limit_bytes=vmem_limit,
        ),
    )(x_p, packed["w1"], packed["b1"], packed["w2"], packed["b2"])

    return out_p[:B, :H].reshape(orig_shape)


if __name__ == "__main__":
    hidden = 32
    batch = 8

    key = jax.random.PRNGKey(0)
    kx, k1, k2, k3, k4 = jax.random.split(key, 5)

    # Deterministic synthetic parameters (PyTorch-Linear-style uniform scale).
    bound = 1.0 / (hidden ** 0.5)
    x = jax.random.normal(kx, (batch, hidden), dtype=jnp.float32)
    w1 = jax.random.uniform(k1, (hidden, hidden), jnp.float32, -bound, bound)
    b1 = jax.random.uniform(k2, (hidden,), jnp.float32, -bound, bound)
    w2 = jax.random.uniform(k3, (hidden, hidden), jnp.float32, -bound, bound)
    b2 = jax.random.uniform(k4, (hidden,), jnp.float32, -bound, bound)

    # Pure-JAX f32 reference.
    h_ref = jnp.maximum(x @ w1 + b1[None, :], 0.0)
    ref = jnp.maximum(h_ref @ w2 + b2[None, :] + x, 0.0)

    # Fast path: bf16 MXU inputs, f32 accumulation/epilogue (skip is bf16-rounded).
    packed_bf16 = pack_residual_block_params(w1, b1, w2, b2, compute_dtype=jnp.bfloat16)
    out = jax.block_until_ready(residual_block(x, packed=packed_bf16))
    assert out.shape == (batch, hidden)
    assert out.dtype == x.dtype
    assert jnp.allclose(out, ref, atol=5e-2, rtol=5e-2)

    # Exact-precision path (f32 compute) matches the reference tightly.
    packed_f32 = pack_residual_block_params(w1, b1, w2, b2, compute_dtype=jnp.float32)
    out_f32 = jax.block_until_ready(residual_block(x, packed=packed_f32))
    assert jnp.allclose(out_f32, ref, atol=1e-4, rtol=1e-4)

    print("KERNEL_OK")
</pallas_src>

<mosaic_0001>
module attributes {stable_mosaic.version = 11 : i64} {
  func.func @resblock_kernel(%arg0: i32, %arg1: i32, %arg2: memref<16x128xbf16, #tpu.memory_space<vmem>>, %arg3: memref<128x128xbf16, #tpu.memory_space<vmem>>, %arg4: memref<1x128xf32, #tpu.memory_space<vmem>>, %arg5: memref<128x128xbf16, #tpu.memory_space<vmem>>, %arg6: memref<1x128xf32, #tpu.memory_space<vmem>>, %arg7: memref<16x128xf32, #tpu.memory_space<vmem>>, %arg8: memref<16x128xf32, #tpu.memory_space<vmem>>) attributes {dimension_semantics = [#tpu.dimension_semantics<parallel>, #tpu.dimension_semantics<arbitrary>], iteration_bounds = array<i64: 1, 1>, scalar_prefetch = 0 : i64, scratch_operands = 1 : i64, tpu.core_type = #tpu.core_type<tc>, window_params = [{transform_indices = @transform_0, window_bounds = array<i64: 16, 128>}, {transform_indices = @transform_1, window_bounds = array<i64: 128, 128>}, {transform_indices = @transform_2, window_bounds = array<i64: 1, 128>}, {transform_indices = @transform_3, window_bounds = array<i64: 128, 128>}, {pipeline_mode = #tpu.pipeline_mode<synchronous>, transform_indices = @transform_4, window_bounds = array<i64: 1, 128>}, {transform_indices = @transform_5, window_bounds = array<i64: 16, 128>}]} {
    %c0 = arith.constant 0 : index
    %c0_0 = arith.constant 0 : index
    %0 = vector.load %arg2[%c0, %c0_0] : memref<16x128xbf16, #tpu.memory_space<vmem>>, vector<16x128xbf16>
    %c0_i32 = arith.constant 0 : i32
    %1 = arith.cmpi eq, %arg1, %c0_i32 : i32
    %2 = arith.extui %1 : i1 to i32
    %c0_i32_1 = arith.constant 0 : i32
    %3 = arith.cmpi ne, %2, %c0_i32_1 : i32
    scf.if %3 {
      %20 = arith.extf %0 : vector<16x128xbf16> to vector<16x128xf32>
      %c0_16 = arith.constant 0 : index
      %c0_17 = arith.constant 0 : index
      %21 = vector.load %arg6[%c0_16, %c0_17] : memref<1x128xf32, #tpu.memory_space<vmem>>, vector<1x128xf32>
      %22 = vector.broadcast %21 : vector<1x128xf32> to vector<16x128xf32>
      %23 = arith.addf %20, %22 : vector<16x128xf32>
      %c0_18 = arith.constant 0 : index
      %c0_19 = arith.constant 0 : index
      %24 = vector.load %arg8[%c0_18, %c0_19] : memref<16x128xf32, #tpu.memory_space<vmem>>, vector<16x128xf32>
      tpu.vector_store %arg8[%c0_18, %c0_19], %23 {strides = array<i32>} : memref<16x128xf32, #tpu.memory_space<vmem>>, vector<16x128xf32>,
    } else {
    }
    %c0_2 = arith.constant 0 : index
    %c0_3 = arith.constant 0 : index
    %4 = vector.load %arg3[%c0_2, %c0_3] : memref<128x128xbf16, #tpu.memory_space<vmem>>, vector<128x128xbf16>
    %cst = arith.constant dense<0.000000e+00> : vector<16x128xf32>
    %5 = tpu.matmul %0, %4, %cst {dimension_numbers = #tpu.dot_dimension_numbers<[1], [0], [0], [1], [0, 0, 1, 1], [], []>} : vector<16x128xbf16>, vector<128x128xbf16>, vector<16x128xf32> -> vector<16x128xf32>
    %c0_4 = arith.constant 0 : index
    %c0_5 = arith.constant 0 : index
    %6 = vector.load %arg4[%c0_4, %c0_5] : memref<1x128xf32, #tpu.memory_space<vmem>>, vector<1x128xf32>
    %7 = vector.broadcast %6 : vector<1x128xf32> to vector<16x128xf32>
    %8 = arith.addf %5, %7 : vector<16x128xf32>
    %cst_6 = arith.constant 0.000000e+00 : f32
    %9 = vector.broadcast %cst_6 : f32 to vector<16x128xf32>
    %10 = arith.maximumf %8, %9 : vector<16x128xf32>
    %11 = arith.truncf %10 : vector<16x128xf32> to vector<16x128xbf16>
    %c0_7 = arith.constant 0 : index
    %c0_8 = arith.constant 0 : index
    %12 = vector.load %arg8[%c0_7, %c0_8] : memref<16x128xf32, #tpu.memory_space<vmem>>, vector<16x128xf32>
    %c0_9 = arith.constant 0 : index
    %c0_10 = arith.constant 0 : index
    %13 = vector.load %arg5[%c0_9, %c0_10] : memref<128x128xbf16, #tpu.memory_space<vmem>>, vector<128x128xbf16>
    %cst_11 = arith.constant dense<0.000000e+00> : vector<16x128xf32>
    %14 = tpu.matmul %11, %13, %cst_11 {dimension_numbers = #tpu.dot_dimension_numbers<[1], [0], [0], [1], [0, 0, 1, 1], [], []>} : vector<16x128xbf16>, vector<128x128xbf16>, vector<16x128xf32> -> vector<16x128xf32>
    %15 = arith.addf %12, %14 : vector<16x128xf32>
    %c0_12 = arith.constant 0 : index
    %c0_13 = arith.constant 0 : index
    %16 = vector.load %arg8[%c0_12, %c0_13] : memref<16x128xf32, #tpu.memory_space<vmem>>, vector<16x128xf32>
    tpu.vector_store %arg8[%c0_12, %c0_13], %15 {strides = array<i32>} : memref<16x128xf32, #tpu.memory_space<vmem>>, vector<16x128xf32>,
    %c0_i32_14 = arith.constant 0 : i32
    %17 = arith.cmpi eq, %arg1, %c0_i32_14 : i32
    %18 = arith.extui %17 : i1 to i32
    %c0_i32_15 = arith.constant 0 : i32
    %19 = arith.cmpi ne, %18, %c0_i32_15 : i32
    scf.if %19 {
      %c0_16 = arith.constant 0 : index
      %c0_17 = arith.constant 0 : index
      %20 = vector.load %arg8[%c0_16, %c0_17] : memref<16x128xf32, #tpu.memory_space<vmem>>, vector<16x128xf32>
      %cst_18 = arith.constant 0.000000e+00 : f32
      %21 = vector.broadcast %cst_18 : f32 to vector<16x128xf32>
      %22 = arith.maximumf %20, %21 : vector<16x128xf32>
      %c0_19 = arith.constant 0 : index
      %c0_20 = arith.constant 0 : index
      %23 = vector.load %arg7[%c0_19, %c0_20] : memref<16x128xf32, #tpu.memory_space<vmem>>, vector<16x128xf32>
      tpu.vector_store %arg7[%c0_19, %c0_20], %22 {strides = array<i32>} : memref<16x128xf32, #tpu.memory_space<vmem>>, vector<16x128xf32>,
    } else {
    }
    return
  }
  func.func @transform_0(%arg0: i32, %arg1: i32) -> (i32, i32) {
    %c0_i32 = arith.constant 0 : i32
    %c0_i32_0 = arith.constant 0 : i32
    return %arg0, %c0_i32 : i32, i32
  }
  func.func @transform_1(%arg0: i32, %arg1: i32) -> (i32, i32) {
    %c0_i32 = arith.constant 0 : i32
    %c0_i32_0 = arith.constant 0 : i32
    return %c0_i32, %arg1 : i32, i32
  }
  func.func @transform_2(%arg0: i32, %arg1: i32) -> (i32, i32) {
    %c0_i32 = arith.constant 0 : i32
    %c0_i32_0 = arith.constant 0 : i32
    return %c0_i32, %arg1 : i32, i32
  }
  func.func @transform_3(%arg0: i32, %arg1: i32) -> (i32, i32) {
    %c0_i32 = arith.constant 0 : i32
    %c0_i32_0 = arith.constant 0 : i32
    return %arg1, %c0_i32 : i32, i32
  }
  func.func @transform_4(%arg0: i32, %arg1: i32) -> (i32, i32) {
    %c0_i32 = arith.constant 0 : i32
    %c0_i32_0 = arith.constant 0 : i32
    %c0_i32_1 = arith.constant 0 : i32
    return %c0_i32, %c0_i32_0 : i32, i32
  }
  func.func @transform_5(%arg0: i32, %arg1: i32) -> (i32, i32) {
    %c0_i32 = arith.constant 0 : i32
    %c0_i32_0 = arith.constant 0 : i32
    return %arg0, %c0_i32 : i32, i32
  }
}

</mosaic_0001>

<llo_original>
// kernel: tpu_custom_call.1
$region0: #{tpu_custom_call.1}
  #allocation0 [shape = 'u32[]', space=smem, size = 0x4, offset = 0x4, fixed_abs, tag = 'smem constant byte address 0x4 - core index']
  #allocation1 [shape = 'u32[144,128]{1,0:T(1,128)}', space=vmem, size = 0x12000, scoped, tag = 'internal scratch']
  #allocation2 [shape = 'f32[16,128]{1,0:T(8,128)}', space=vmem, size = 0x2000, scoped, tag = 'scratch operand']
  %s0 = inlined_call_operand.hbm [shape: bf16[16,128], index: 0, kind: input, shape index: {}]
  %s1 = inlined_call_operand.hbm [shape: bf16[128,128], index: 1, kind: input, shape index: {}]
  %s2 = inlined_call_operand.vmem [shape: f32[1,128], index: 2, kind: input, shape index: {}]
  %s3 = inlined_call_operand.hbm [shape: bf16[128,128], index: 3, kind: input, shape index: {}]
  %s4 = inlined_call_operand.vmem [shape: f32[1,128], index: 4, kind: input, shape index: {}]
  %s5 = inlined_call_operand.hbm [shape: f32[16,128], index: 5, kind: output, shape index: {}]
  %s6 = sld [smem:[#allocation0]]
  $region50: #{tpu_custom_call.1} parent=0
    _
  %s8 = ssub.s32 1, %s6
  %s9 = scalar_select 0, %s8, %s6
  $region1: #{tpu_custom_call.1} parent=0
    #allocation3 [shape = 'u8[4096]{0}', space=vmem, size = 0x1000, scoped, tag = 'input window, operand 0, single buffered']
    #allocation4 [shape = 's32[1]{0}', space=sflag, size = 0x4, scoped, tag = 'scoped memory for tpu_custom_call.1']
    #allocation5 [shape = 's32[1]{0}', space=sflag, size = 0x4, scoped, tag = 'scoped memory for tpu_custom_call.1']
    #allocation6 [shape = 'u8[32768]{0}', space=vmem, size = 0x8000, scoped, tag = 'input window, operand 1, single buffered']
    #allocation7 [shape = 's32[1]{0}', space=sflag, size = 0x4, scoped, tag = 'scoped memory for tpu_custom_call.1']
    #allocation8 [shape = 'u8[32768]{0}', space=vmem, size = 0x8000, scoped, tag = 'input window, operand 3, single buffered']
    #allocation9 [shape = 'u8[8192]{0}', space=vmem, size = 0x2000, scoped, tag = 'output window, operand 0, single buffered']
    %10 = vsyncpa [#allocation4], 0
    %11 = vsyncpa [#allocation7], 0
    %12 = vsyncpa [#allocation5], 0
    // Predicated region
    $region2: #{tpu_custom_call.1} parent=1 // pred_check
      _
    $region3: #{tpu_custom_call.1} parent=1 // pred_check_branch
      %14 = sbr.rel (0) target = $region5
    $region4: #{tpu_custom_call.1} parent=1 // pred_region
      %s16 = ssub.s32 128, 128
      %17 = vsyncadd [#allocation4], %s16
      %s18 = sshll.u32 [#allocation3], 4
      %s19 = int_to_ptr.vmem [resolvable:$true] %s18
      %24 = dma.hbm_to_vmem [thread:$0]  %s0, 128, %s19, [#allocation4], 64, 64, 4
    $region5: #{tpu_custom_call.1} parent=1 // pred_fallthru
      _
    // Predicated region
    $region6: #{tpu_custom_call.1} parent=1 // pred_check
      _
    $region7: #{tpu_custom_call.1} parent=1 // pred_check_branch
      %26 = sbr.rel (0) target = $region9
    $region8: #{tpu_custom_call.1} parent=1 // pred_region
      %s28 = ssub.s32 1024, 1024
      %29 = vsyncadd [#allocation7], %s28
      %s30 = sshll.u32 [#allocation6], 4
      %s31 = int_to_ptr.vmem [resolvable:$true] %s30
      %36 = dma.hbm_to_vmem [thread:$0]  %s1, 1024, %s31, [#allocation7], 64, 64, 4
    $region9: #{tpu_custom_call.1} parent=1 // pred_fallthru
      _
    // Predicated region
    $region10: #{tpu_custom_call.1} parent=1 // pred_check
      _
    $region11: #{tpu_custom_call.1} parent=1 // pred_check_branch
      %38 = sbr.rel (0) target = $region13
    $region12: #{tpu_custom_call.1} parent=1 // pred_region
      _
    $region13: #{tpu_custom_call.1} parent=1 // pred_fallthru
      _
    // Predicated region
    $region14: #{tpu_custom_call.1} parent=1 // pred_check
      _
    $region15: #{tpu_custom_call.1} parent=1 // pred_check_branch
      %40 = sbr.rel (0) target = $region17
    $region16: #{tpu_custom_call.1} parent=1 // pred_region
      %s42 = ssub.s32 1024, 1024
      %43 = vsyncadd [#allocation7], %s42
      %s44 = sshll.u32 [#allocation8], 4
      %s45 = int_to_ptr.vmem [resolvable:$true] %s44
      %50 = dma.hbm_to_vmem [thread:$0]  %s3, 1024, %s45, [#allocation7], 64, 64, 4
    $region17: #{tpu_custom_call.1} parent=1 // pred_fallthru
      _
    // Predicated region
    $region18: #{tpu_custom_call.1} parent=1 // pred_check
      _
    $region19: #{tpu_custom_call.1} parent=1 // pred_check_branch
      %52 = sbr.rel (0) target = $region21
    $region20: #{tpu_custom_call.1} parent=1 // pred_region
      _
    $region21: #{tpu_custom_call.1} parent=1 // pred_fallthru
      _
    // Predicated region
    $region22: #{tpu_custom_call.1} parent=1 // pred_check
      _
    $region23: #{tpu_custom_call.1} parent=1 // pred_check_branch
      %54 = sbr.rel (0) target = $region25
    $region24: #{tpu_custom_call.1} parent=1 // pred_region
      %55 = dma.done [#allocation4], 128
    $region25: #{tpu_custom_call.1} parent=1 // pred_fallthru
      _
    // Predicated region
    $region26: #{tpu_custom_call.1} parent=1 // pred_check
      _
    $region27: #{tpu_custom_call.1} parent=1 // pred_check_branch
      %57 = sbr.rel (0) target = $region29
    $region28: #{tpu_custom_call.1} parent=1 // pred_region
      %58 = dma.done [#allocation7], 1024
    $region29: #{tpu_custom_call.1} parent=1 // pred_fallthru
      _
    // Predicated region
    $region30: #{tpu_custom_call.1} parent=1 // pred_check
      _
    $region31: #{tpu_custom_call.1} parent=1 // pred_check_branch
      %60 = sbr.rel (0) target = $region33
    $region32: #{tpu_custom_call.1} parent=1 // pred_region
      %61 = dma.done [#allocation7], 1024
    $region33: #{tpu_custom_call.1} parent=1 // pred_fallthru
      _
    %v63 = vld [vmem:[#allocation3] sm:$0xf]
    %v64 = vld [vmem:[#allocation3 + $0x4] sm:$0xf]
    %p65 = scmp.eq.s32.totalorder 0, 0
    // Predicated region
    $region34: #{tpu_custom_call.1} parent=1 // pred_check
      %p66 = pneg %p65
    $region35: #{tpu_custom_call.1} parent=1 // pred_check_branch
      %68 = sbr.rel (%p66) target = $region37
    $region36: #{tpu_custom_call.1} parent=1 // pred_region
      %v69 = vunpack.c.l.bf16 %v63
      %v70 = vunpack.c.l.bf16 %v64
      %v71 = vld [vmem:[%s4] sm:$0x1]
      %v73 = vlaneseq
      %v74 = vshrl.u32 %v73, 7
      %v75 = vsub.s32 0, %v74
      %v76 = vrot.slane %v71, %v75
      %v78 = vadd.f32 %v69, %v76
      %v79 = vadd.f32 %v70, %v76
      %80 = vst [vmem:[#allocation2] sm:$0xff] %v78
      %81 = vst [vmem:[#allocation2 + $0x8] sm:$0xff] %v79
    $region37: #{tpu_custom_call.1} parent=1 // pred_fallthru
      _
    %v82 = vld [vmem:[#allocation6] sm:$0xf]
    %v83 = vld [vmem:[#allocation6 + $0x4] sm:$0xf]
    %v84 = vld [vmem:[#allocation6 + $0x8] sm:$0xf]
    %v85 = vld [vmem:[#allocation6 + $0xc] sm:$0xf]
    %v86 = vld [vmem:[#allocation6 + $0x10] sm:$0xf]
    %v87 = vld [vmem:[#allocation6 + $0x14] sm:$0xf]
    %v88 = vld [vmem:[#allocation6 + $0x18] sm:$0xf]
    %v89 = vld [vmem:[#allocation6 + $0x1c] sm:$0xf]
    %v90 = vld [vmem:[#allocation6 + $0x20] sm:$0xf]
    %v91 = vld [vmem:[#allocation6 + $0x24] sm:$0xf]
    %v92 = vld [vmem:[#allocation6 + $0x28] sm:$0xf]
    %v93 = vld [vmem:[#allocation6 + $0x2c] sm:$0xf]
    %v94 = vld [vmem:[#allocation6 + $0x30] sm:$0xf]
    %v95 = vld [vmem:[#allocation6 + $0x34] sm:$0xf]
    %v96 = vld [vmem:[#allocation6 + $0x38] sm:$0xf]
    %v97 = vld [vmem:[#allocation6 + $0x3c] sm:$0xf]
    %v98 = vld [vmem:[%s2] sm:$0x1]
    %v100 = vlaneseq
    %v101 = vshrl.u32 %v100, 7
    %v102 = vsub.s32 0, %v101
    %v103 = vrot.slane %v98, %v102
    %v107 = vunpack.c.l.b16 %v63
    %v108 = vunpack.c.l.b16 %v64
    %v109 = vpack.c.b16 %v108, %v107
    %v127 = vunpack.c.l.b16 %v82
    %v128 = vunpack.c.l.b16 %v83
    %v129 = vunpack.c.l.b16 %v84
    %v130 = vunpack.c.l.b16 %v85
    %v131 = vunpack.c.l.b16 %v86
    %v132 = vunpack.c.l.b16 %v87
    %v133 = vunpack.c.l.b16 %v88
    %v134 = vunpack.c.l.b16 %v89
    %v135 = vunpack.c.l.b16 %v90
    %v136 = vunpack.c.l.b16 %v91
    %v137 = vunpack.c.l.b16 %v92
    %v138 = vunpack.c.l.b16 %v93
    %v139 = vunpack.c.l.b16 %v94
    %v140 = vunpack.c.l.b16 %v95
    %v141 = vunpack.c.l.b16 %v96
    %v142 = vunpack.c.l.b16 %v97
    %v143 = vpack.c.b16 %v128, %v127
    %v144 = vpack.c.b16 %v130, %v129
    %v145 = vpack.c.b16 %v132, %v131
    %v146 = vpack.c.b16 %v134, %v133
    %v147 = vpack.c.b16 %v136, %v135
    %v148 = vpack.c.b16 %v138, %v137
    %v149 = vpack.c.b16 %v140, %v139
    %v150 = vpack.c.b16 %v142, %v141
    %159 = vmatprep.subr.bf16.mxu0 0
    %160 = vmatpush1.bf16.msra.mxu0 %v150
    %161 = vmatprep.subr.bf16.mxu0 0
    %162 = vmatpush1.bf16.msra.mxu0 %v149
    %163 = vmatprep.subr.bf16.mxu0 0
    %164 = vmatpush1.bf16.msra.mxu0 %v148
    %165 = vmatprep.subr.bf16.mxu0 0
    %166 = vmatpush1.bf16.msra.mxu0 %v147
    %167 = vmatprep.subr.bf16.mxu0 0
    %168 = vmatpush1.bf16.msra.mxu0 %v146
    %169 = vmatprep.subr.bf16.mxu0 0
    %170 = vmatpush1.bf16.msra.mxu0 %v145
    %171 = vmatprep.subr.bf16.mxu0 0
    %172 = vmatpush1.bf16.msra.mxu0 %v144
    %173 = vmatprep.subr.bf16.mxu0 0
    %174 = vmatpush1.bf16.msra.mxu0 %v143
    %175 = vmatprep.subr.bf16.mxu0 0
    %176 = vmatpush2.bf16.msra.mxu0 0
    %177 = vmatprep.subr.bf16.mxu0 0
    %178 = vmatpush2.bf16.msra.mxu0 0
    %179 = vmatprep.subr.bf16.mxu0 0
    %180 = vmatpush2.bf16.msra.mxu0 0
    %181 = vmatprep.subr.bf16.mxu0 0
    %182 = vmatpush2.bf16.msra.mxu0 0
    %183 = vmatprep.subr.bf16.mxu0 0
    %184 = vmatpush2.bf16.msra.mxu0 0
    %185 = vmatprep.subr.bf16.mxu0 0
    %186 = vmatpush2.bf16.msra.mxu0 0
    %187 = vmatprep.subr.bf16.mxu0 0
    %188 = vmatpush2.bf16.msra.mxu0 0
    %189 = vmatprep.subr.bf16.mxu0 0
    %190 = vmatpush2.bf16.msra.mxu0 0
    %191 = vmatprep.mubr.bf16.mxu0 0
    %192 = vmatmul.mubr.bf16.gmra.mxu0 %v109
    %v193 = vpop.f32.mrf.mxu0
    %v194 = vadd.f32 %v103, %v193
    %v195 = vpop.f32.mrf.mxu0
    %v196 = vpop.f32.mrf.mxu0
    %v197 = vadd.f32 %v103, %v196
    %v198 = vpop.f32.mrf.mxu0
    %199 = vdwg.mxu0
    %v200 = vmax.f32 %v194, 0.0
    %v201 = vmax.f32 %v197, 0.0
    %v202 = vpack.c.bf16 %v201, %v200
    %v203 = vld [vmem:[#allocation2] sm:$0xff]
    %v204 = vld [vmem:[#allocation2 + $0x8] sm:$0xff]
    %v205 = vld [vmem:[#allocation8] sm:$0xf]
    %v206 = vld [vmem:[#allocation8 + $0x4] sm:$0xf]
    %v207 = vld [vmem:[#allocation8 + $0x8] sm:$0xf]
    %v208 = vld [vmem:[#allocation8 + $0xc] sm:$0xf]
    %v209 = vld [vmem:[#allocation8 + $0x10] sm:$0xf]
    %v210 = vld [vmem:[#allocation8 + $0x14] sm:$0xf]
    %v211 = vld [vmem:[#allocation8 + $0x18] sm:$0xf]
    %v212 = vld [vmem:[#allocation8 + $0x1c] sm:$0xf]
    %v213 = vld [vmem:[#allocation8 + $0x20] sm:$0xf]
    %v214 = vld [vmem:[#allocation8 + $0x24] sm:$0xf]
    %v215 = vld [vmem:[#allocation8 + $0x28] sm:$0xf]
    %v216 = vld [vmem:[#allocation8 + $0x2c] sm:$0xf]
    %v217 = vld [vmem:[#allocation8 + $0x30] sm:$0xf]
    %v218 = vld [vmem:[#allocation8 + $0x34] sm:$0xf]
    %v219 = vld [vmem:[#allocation8 + $0x38] sm:$0xf]
    %v220 = vld [vmem:[#allocation8 + $0x3c] sm:$0xf]
    %v237 = vunpack.c.l.b16 %v205
    %v238 = vunpack.c.l.b16 %v206
    %v239 = vunpack.c.l.b16 %v207
    %v240 = vunpack.c.l.b16 %v208
    %v241 = vunpack.c.l.b16 %v209
    %v242 = vunpack.c.l.b16 %v210
    %v243 = vunpack.c.l.b16 %v211
    %v244 = vunpack.c.l.b16 %v212
    %v245 = vunpack.c.l.b16 %v213
    %v246 = vunpack.c.l.b16 %v214
    %v247 = vunpack.c.l.b16 %v215
    %v248 = vunpack.c.l.b16 %v216
    %v249 = vunpack.c.l.b16 %v217
    %v250 = vunpack.c.l.b16 %v218
    %v251 = vunpack.c.l.b16 %v219
    %v252 = vunpack.c.l.b16 %v220
    %v253 = vpack.c.b16 %v238, %v237
    %v254 = vpack.c.b16 %v240, %v239
    %v255 = vpack.c.b16 %v242, %v241
    %v256 = vpack.c.b16 %v244, %v243
    %v257 = vpack.c.b16 %v246, %v245
    %v258 = vpack.c.b16 %v248, %v247
    %v259 = vpack.c.b16 %v250, %v249
    %v260 = vpack.c.b16 %v252, %v251
    %269 = vmatprep.subr.bf16.mxu0 0
    %270 = vmatpush1.bf16.msra.mxu0 %v260
    %271 = vmatprep.subr.bf16.mxu0 0
    %272 = vmatpush1.bf16.msra.mxu0 %v259
    %273 = vmatprep.subr.bf16.mxu0 0
    %274 = vmatpush1.bf16.msra.mxu0 %v258
    %275 = vmatprep.subr.bf16.mxu0 0
    %276 = vmatpush1.bf16.msra.mxu0 %v257
    %277 = vmatprep.subr.bf16.mxu0 0
    %278 = vmatpush1.bf16.msra.mxu0 %v256
    %279 = vmatprep.subr.bf16.mxu0 0
    %280 = vmatpush1.bf16.msra.mxu0 %v255
    %281 = vmatprep.subr.bf16.mxu0 0
    %282 = vmatpush1.bf16.msra.mxu0 %v254
    %283 = vmatprep.subr.bf16.mxu0 0
    %284 = vmatpush1.bf16.msra.mxu0 %v253
    %285 = vmatprep.subr.bf16.mxu0 0
    %286 = vmatpush2.bf16.msra.mxu0 0
    %287 = vmatprep.subr.bf16.mxu0 0
    %288 = vmatpush2.bf16.msra.mxu0 0
    %289 = vmatprep.subr.bf16.mxu0 0
    %290 = vmatpush2.bf16.msra.mxu0 0
    %291 = vmatprep.subr.bf16.mxu0 0
    %292 = vmatpush2.bf16.msra.mxu0 0
    %293 = vmatprep.subr.bf16.mxu0 0
    %294 = vmatpush2.bf16.msra.mxu0 0
    %295 = vmatprep.subr.bf16.mxu0 0
    %296 = vmatpush2.bf16.msra.mxu0 0
    %297 = vmatprep.subr.bf16.mxu0 0
    %298 = vmatpush2.bf16.msra.mxu0 0
    %299 = vmatprep.subr.bf16.mxu0 0
    %300 = vmatpush2.bf16.msra.mxu0 0
    %301 = vmatprep.mubr.bf16.mxu0 0
    %302 = vmatmul.mubr.bf16.gmra.mxu0 %v202
    %v303 = vpop.f32.mrf.mxu0
    %v304 = vadd.f32 0.0, %v303
    %v305 = vpop.f32.mrf.mxu0
    %v306 = vpop.f32.mrf.mxu0
    %v307 = vadd.f32 0.0, %v306
    %v308 = vpop.f32.mrf.mxu0
    %309 = vdwg.mxu0
    %v310 = vadd.f32 %v203, %v304
    %v311 = vadd.f32 %v204, %v307
    %312 = vst [vmem:[#allocation2] sm:$0xff] %v310
    %313 = vst [vmem:[#allocation2 + $0x8] sm:$0xff] %v311
    // Predicated region
    $region38: #{tpu_custom_call.1} parent=1 // pred_check
      %p314 = pneg %p65
    $region39: #{tpu_custom_call.1} parent=1 // pred_check_branch
      %316 = sbr.rel (%p314) target = $region41
    $region40: #{tpu_custom_call.1} parent=1 // pred_region
      %v317 = vld [vmem:[#allocation2] sm:$0xff]
      %v318 = vld [vmem:[#allocation2 + $0x8] sm:$0xff]
      %v319 = vmax.f32 %v317, 0.0
      %v320 = vmax.f32 %v318, 0.0
      %321 = vst [vmem:[#allocation9] sm:$0xff] %v319
      %322 = vst [vmem:[#allocation9 + $0x8] sm:$0xff] %v320
    $region41: #{tpu_custom_call.1} parent=1 // pred_fallthru
      _
    // Predicated region
    $region42: #{tpu_custom_call.1} parent=1 // pred_check
      _
    $region43: #{tpu_custom_call.1} parent=1 // pred_check_branch
      %324 = sbr.rel (0) target = $region45
    $region44: #{tpu_custom_call.1} parent=1 // pred_region
      %s326 = ssub.s32 256, 256
      %327 = vsyncadd [#allocation5], %s326
      %s328 = sshll.u32 [#allocation9], 4
      %s329 = int_to_ptr.vmem [resolvable:$true] %s328
      %334 = dma.vmem_to_hbm [thread:$0]  %s329, 256, %s5, [#allocation5], 128, 128, 8
    $region45: #{tpu_custom_call.1} parent=1 // pred_fallthru
      _
    // Predicated region
    $region46: #{tpu_custom_call.1} parent=1 // pred_check
      _
    $region47: #{tpu_custom_call.1} parent=1 // pred_check_branch
      %336 = sbr.rel (0) target = $region49
    $region48: #{tpu_custom_call.1} parent=1 // pred_region
      %337 = dma.done [#allocation5], 256
    $region49: #{tpu_custom_call.1} parent=1 // pred_fallthru
      _
    %338 = vsyncpa [#allocation4], 1
    %339 = vsyncpa [#allocation7], 1
    %340 = vsyncpa [#allocation5], 1

</llo_original>
